<compile_context>
chip_gen: v6e
topology: v6e:2x2x1
jax: 0.10.0
libtpu: 0.0.40
codegen_flags: <defaults>
</compile_context>

<pallas_src>
import functools

import jax
import jax.numpy as jnp
from jax.experimental import pallas as pl
from jax.experimental.pallas import tpu as pltpu


def _round_up(x, m):
    return (x + m - 1) // m * m


def _vmem_capacity_bytes():
    """Generation-aware physical VMEM size (v5e/v6e: 128 MiB, v7x: 64 MiB)."""
    try:
        info = pltpu.get_tpu_info()
        cap = getattr(info, "vmem_capacity_bytes", None)
        if cap:
            return int(cap)
    except Exception:
        pass
    return 64 * 1024 * 1024  # conservative fallback (v7x per-TC VMEM)


def _bag_counts(idx, tv, v_offset):
    """Per-row token counts restricted to vocab ids [v_offset, v_offset + tv).

    idx uses -1 as the pad sentinel, so a single compare per token position suffices
    (no separate pad check in the hot loop). Accumulates in int32, converts once.
    """
    TB, L = idx.shape
    tile_ids = v_offset + jax.lax.broadcasted_iota(jnp.int32, (1, tv), 1)   # (1, TV)
    counts = jnp.zeros((TB, tv), jnp.int32)
    for l in range(L):                                  # L is small & static: unrolled
        col = idx[:, l:l + 1]                           # (TB, 1) static lane slice
        counts = counts + (col == tile_ids).astype(jnp.int32)
    return counts.astype(jnp.float32)                   # single convert after the loop


def _finalize(idx, acc, head_ref, out_ref, num_classes):
    """Mean over non-pad tokens, head matmul, masked log_softmax, lane-dense store."""
    nonpad = jnp.sum((idx >= 0).astype(jnp.float32), axis=1, keepdims=True)  # (TB, 1)
    mean_emb = acc / jnp.maximum(nonpad, 1.0)            # empty bag -> zeros (EmbeddingBag)

    logits = jnp.dot(mean_emb.astype(head_ref.dtype), head_ref[...],
                     preferred_element_type=jnp.float32)  # (TB, C_pad)

    c_iota = jax.lax.broadcasted_iota(jnp.int32, (1, logits.shape[1]), 1)
    valid = c_iota < num_classes
    logits = jnp.where(valid, logits, -jnp.inf)
    m = jnp.max(logits, axis=-1, keepdims=True)
    shifted = logits - m
    lse = jnp.log(jnp.sum(jnp.exp(shifted), axis=-1, keepdims=True))
    out_ref[...] = jnp.where(valid, shifted - lse, 0.0)


def _fasttext_resident_kernel(idx_ref, emb_ref, head_ref, out_ref, *, num_classes):
    """Whole (padded) embedding table resident in VMEM; grid = (batch tiles,)."""
    idx = idx_ref[...]                                   # (TB, L) int32, pad -> -1
    counts = _bag_counts(idx, emb_ref.shape[0], 0)       # (TB, V_pad)
    acc = jnp.dot(counts, emb_ref[...], preferred_element_type=jnp.float32)
    _finalize(idx, acc, head_ref, out_ref, num_classes)


def _fasttext_streamed_kernel(idx_ref, emb_ref, head_ref, out_ref, acc_ref, *,
                              num_classes):
    """Table streamed tile-by-tile over the vocab reduction axis; grid = (b, v)."""
    v = pl.program_id(1)

    @pl.when(v == 0)
    def _init():
        acc_ref[...] = jnp.zeros_like(acc_ref)

    idx = idx_ref[...]                                   # (TB, L) int32, pad -> -1
    TV = emb_ref.shape[0]
    counts = _bag_counts(idx, TV, v * TV)                # (TB, TV)
    acc_ref[...] += jnp.dot(counts, emb_ref[...], preferred_element_type=jnp.float32)

    @pl.when(v == pl.num_programs(1) - 1)
    def _fin():
        _finalize(idx, acc_ref[...], head_ref, out_ref, num_classes)


def fasttext_forward(indexes, emb_weight, head_weight, pad_index, *,
                     batch_tile=128, vocab_tile=None, force_stream=False):
    indexes = indexes.astype(jnp.int32)
    B, L = indexes.shape
    V, D = emb_weight.shape
    C = head_weight.shape[0]

    # --- Batch tiling: track the real batch; >= 2 tiles when B >= 16 (megacore). ---
    TB = _round_up(max(min(B, int(batch_tile)), 1), 8)
    if B >= 16 and _round_up(B, TB) // TB < 2:
        TB = _round_up(-(-B // 2), 8)
    B_pad = _round_up(B, TB)

    C_pad = _round_up(C, 128)

    # --- Generation-aware VMEM budget (65% of physical; v7x is half of v5e/v6e). ---
    vmem_budget = int(_vmem_capacity_bytes() * 0.65)

    ebytes = jnp.dtype(emb_weight.dtype).itemsize
    fixed_bytes = (2 * TB * L * 4           # idx blocks (double-buffered)
                   + 2 * TB * C_pad * 4     # output blocks
                   + 2 * D * C_pad * 4      # head blocks
                   + TB * D * 4)            # accumulator scratch

    # --- Pad sentinel: -1 never matches a vocab id, hoisting the pad check out of
    #     the hot loop. Padded batch rows are all -1 (zero bags, sliced off below). ---
    idx_p = jnp.where(indexes == pad_index, jnp.int32(-1), indexes)
    idx_p = jnp.pad(idx_p, ((0, B_pad - B), (0, 0)), constant_values=-1)

    # Head pre-transposed to (D, C) and classes padded to lane-dense 128 columns.
    head_t = jnp.pad(head_weight.T.astype(jnp.float32), ((0, 0), (0, C_pad - C)))

    V_res = _round_up(V, 128)
    resident_need = (2 * V_res * D * ebytes        # table (conservative: 2 buffers)
                     + 2 * TB * V_res * 4          # counts temps (int32 + f32)
                     + fixed_bytes)
    use_resident = (not force_stream) and resident_need <= vmem_budget

    if use_resident:
        # ---------------- resident-table path: no vocab grid axis ----------------
        emb_p = jnp.pad(emb_weight, ((0, V_res - V), (0, 0)))
        vmem_limit = int(min(vmem_budget, max(32 * 1024 * 1024, 2 * resident_need)))
        kernel = functools.partial(_fasttext_resident_kernel, num_classes=C)
        out = pl.pallas_call(
            kernel,
            out_shape=jax.ShapeDtypeStruct((B_pad, C_pad), jnp.float32),
            grid_spec=pltpu.PrefetchScalarGridSpec(
                num_scalar_prefetch=0,
                grid=(B_pad // TB,),
                in_specs=[
                    pl.BlockSpec((TB, L), lambda b: (b, 0)),
                    pl.BlockSpec((V_res, D), lambda b: (0, 0)),   # constant -> fetched once
                    pl.BlockSpec((D, C_pad), lambda b: (0, 0)),
                ],
                out_specs=pl.BlockSpec((TB, C_pad), lambda b: (b, 0)),
            ),
            compiler_params=pltpu.CompilerParams(
                dimension_semantics=("parallel",),
                vmem_limit_bytes=vmem_limit),
        )(idx_p, emb_p, head_t)
        return out[:B, :C]

    # ---------------- streamed path: vocab reduction axis last ----------------
    if vocab_tile is None:
        # Target ~2 MiB per embedding tile (amortizes per-grid-step overhead),
        # bounded by the VMEM budget including the (TB, TV) counts temporaries.
        tv_target = max(512, (2 << 20) // max(D * ebytes, 1))
        tv_cap = max(128, (vmem_budget - fixed_bytes) // max(2 * D * ebytes + 8 * TB, 1))
        TV = max(128, min(tv_target, tv_cap))
    else:
        TV = max(128, int(vocab_tile))
    TV = min(_round_up(TV, 128), _round_up(V, 128))
    V_pad = _round_up(V, TV)
    emb_p = jnp.pad(emb_weight, ((0, V_pad - V), (0, 0)))

    need = 2 * TV * D * ebytes + 2 * TB * TV * 4 + fixed_bytes
    vmem_limit = int(min(vmem_budget, max(32 * 1024 * 1024, 2 * need)))

    kernel = functools.partial(_fasttext_streamed_kernel, num_classes=C)
    out = pl.pallas_call(
        kernel,
        out_shape=jax.ShapeDtypeStruct((B_pad, C_pad), jnp.float32),
        grid_spec=pltpu.PrefetchScalarGridSpec(
            num_scalar_prefetch=0,
            grid=(B_pad // TB, V_pad // TV),         # vocab reduction axis last
            in_specs=[
                pl.BlockSpec((TB, L), lambda b, v: (b, 0)),
                pl.BlockSpec((TV, D), lambda b, v: (v, 0),
                             pipeline_mode=pl.Buffered(2)),   # sweep 3 on v5e if DMA exposed
                pl.BlockSpec((D, C_pad), lambda b, v: (0, 0)),
            ],
            out_specs=pl.BlockSpec((TB, C_pad), lambda b, v: (b, 0)),
            scratch_shapes=[pltpu.VMEM((TB, D), jnp.float32)],
        ),
        compiler_params=pltpu.CompilerParams(
            dimension_semantics=("parallel", "arbitrary"),
            vmem_limit_bytes=vmem_limit),
    )(idx_p, emb_p, head_t)
    return out[:B, :C]


def reference_forward(indexes, emb_weight, head_weight, pad_index):
    # Pure-JAX reference of EmbeddingBag(mean, padding_idx) + Linear(no bias) + log_softmax.
    gathered = emb_weight[indexes]                                    # (B, L, D)
    mask = (indexes != pad_index).astype(jnp.float32)[..., None]      # (B, L, 1)
    summed = jnp.sum(gathered * mask, axis=1)                         # (B, D)
    denom = jnp.maximum(jnp.sum(mask, axis=1), 1.0)                   # (B, 1)
    mean_emb = summed / denom
    logits = mean_emb @ head_weight.T
    return jax.nn.log_softmax(logits, axis=-1)


if __name__ == "__main__":
    vocab_size = 128
    embedding_dim = 32
    num_classes = 8
    pad_index = 0
    B, L = 8, 8

    key = jax.random.PRNGKey(0)
    k_emb, k_idx, k_mask = jax.random.split(key, 3)

    # __init_weights: embedding ~ U(-1/emb_dim, 1/emb_dim); head = 0.
    emb_weight = jax.random.uniform(
        k_emb, (vocab_size, embedding_dim), dtype=jnp.float32,
        minval=-1.0 / embedding_dim, maxval=1.0 / embedding_dim)
    head_weight = jnp.zeros((num_classes, embedding_dim), dtype=jnp.float32)

    # Random token indices; sprinkle in padding tokens (first column forced non-pad).
    idx = jax.random.randint(k_idx, (B, L), 1, vocab_size, dtype=jnp.int32)
    pad_mask = jax.random.bernoulli(k_mask, 0.25, (B, L))
    pad_mask = pad_mask.at[:, 0].set(False)
    indexes = jnp.where(pad_mask, jnp.int32(pad_index), idx)

    # Check 1: init weights, auto (resident-table) path.
    out = jax.block_until_ready(
        fasttext_forward(indexes, emb_weight, head_weight, pad_index))
    ref = reference_forward(indexes, emb_weight, head_weight, pad_index)
    assert out.shape == (B, num_classes)
    assert jnp.allclose(out, ref, atol=1e-5, rtol=1e-5), "mismatch (resident path)"

    # Check 2: non-zero head, forced streamed path (2 batch tiles x 3 vocab tiles) to
    # exercise the pl.when accumulate/finalize machinery and class-lane masking.
    V2, D2, C2, B2, L2 = 300, 32, 5, 20, 12
    k1, k2, k3, k4 = jax.random.split(jax.random.PRNGKey(1), 4)
    emb2 = jax.random.uniform(k1, (V2, D2), jnp.float32, -1.0 / D2, 1.0 / D2)
    head2 = jax.random.normal(k2, (C2, D2), jnp.float32) * 0.1
    idx2 = jax.random.randint(k3, (B2, L2), 1, V2, dtype=jnp.int32)
    mask2 = jax.random.bernoulli(k4, 0.3, (B2, L2)).at[:, 0].set(False)
    indexes2 = jnp.where(mask2, jnp.int32(pad_index), idx2)
    ref2 = reference_forward(indexes2, emb2, head2, pad_index)

    out2 = jax.block_until_ready(
        fasttext_forward(indexes2, emb2, head2, pad_index,
                         batch_tile=16, vocab_tile=128, force_stream=True))
    assert out2.shape == (B2, C2)
    assert jnp.allclose(out2, ref2, atol=1e-5, rtol=1e-5), "mismatch (streamed path)"

    # Check 3: same data through the auto (resident) path — both code paths agree.
    out2b = jax.block_until_ready(
        fasttext_forward(indexes2, emb2, head2, pad_index))
    assert jnp.allclose(out2b, ref2, atol=1e-5, rtol=1e-5), "mismatch (resident, case 2)"

    print("KERNEL_OK")
</pallas_src>

<mosaic_0001>
module attributes {stable_mosaic.version = 11 : i64} {
  func.func @_fasttext_resident_kernel(%arg0: i32, %arg1: memref<8x8xi32, #tpu.memory_space<vmem>>, %arg2: memref<128x32xf32, #tpu.memory_space<vmem>>, %arg3: memref<32x128xf32, #tpu.memory_space<vmem>>, %arg4: memref<8x128xf32, #tpu.memory_space<vmem>>) attributes {dimension_semantics = [#tpu.dimension_semantics<parallel>], iteration_bounds = array<i64: 1>, scalar_prefetch = 0 : i64, scratch_operands = 0 : i64, tpu.core_type = #tpu.core_type<tc>, window_params = [{transform_indices = @transform_0, window_bounds = array<i64: 8, 8>}, {pipeline_mode = #tpu.pipeline_mode<synchronous>, transform_indices = @transform_1, window_bounds = array<i64: 128, 32>}, {pipeline_mode = #tpu.pipeline_mode<synchronous>, transform_indices = @transform_2, window_bounds = array<i64: 32, 128>}, {transform_indices = @transform_3, window_bounds = array<i64: 8, 128>}]} {
    %c0 = arith.constant 0 : index
    %c0_0 = arith.constant 0 : index
    %0 = vector.load %arg1[%c0, %c0_0] : memref<8x8xi32, #tpu.memory_space<vmem>>, vector<8x8xi32>
    %1 = tpu.iota {dimensions = array<i32: 1>} : vector<1x128xi32>
    %c0_i32 = arith.constant 0 : i32
    %2 = vector.broadcast %c0_i32 : i32 to vector<1x128xi32>
    %3 = arith.addi %2, %1 : vector<1x128xi32>
    %c0_i32_1 = arith.constant 0 : i32
    %4 = vector.broadcast %c0_i32_1 : i32 to vector<8x128xi32>
    %5 = vector.extract_strided_slice %0 {offsets = [0, 0], sizes = [8, 1], strides = [1, 1]} : vector<8x8xi32> to vector<8x1xi32>
    %6 = vector.broadcast %5 : vector<8x1xi32> to vector<8x128xi32>
    %7 = vector.broadcast %3 : vector<1x128xi32> to vector<8x128xi32>
    %8 = arith.cmpi eq, %6, %7 : vector<8x128xi32>
    %9 = arith.extui %8 : vector<8x128xi1> to vector<8x128xi32>
    %10 = arith.addi %4, %9 : vector<8x128xi32>
    %11 = vector.extract_strided_slice %0 {offsets = [0, 1], sizes = [8, 1], strides = [1, 1]} : vector<8x8xi32> to vector<8x1xi32>
    %12 = vector.broadcast %11 : vector<8x1xi32> to vector<8x128xi32>
    %13 = vector.broadcast %3 : vector<1x128xi32> to vector<8x128xi32>
    %14 = arith.cmpi eq, %12, %13 : vector<8x128xi32>
    %15 = arith.extui %14 : vector<8x128xi1> to vector<8x128xi32>
    %16 = arith.addi %10, %15 : vector<8x128xi32>
    %17 = vector.extract_strided_slice %0 {offsets = [0, 2], sizes = [8, 1], strides = [1, 1]} : vector<8x8xi32> to vector<8x1xi32>
    %18 = vector.broadcast %17 : vector<8x1xi32> to vector<8x128xi32>
    %19 = vector.broadcast %3 : vector<1x128xi32> to vector<8x128xi32>
    %20 = arith.cmpi eq, %18, %19 : vector<8x128xi32>
    %21 = arith.extui %20 : vector<8x128xi1> to vector<8x128xi32>
    %22 = arith.addi %16, %21 : vector<8x128xi32>
    %23 = vector.extract_strided_slice %0 {offsets = [0, 3], sizes = [8, 1], strides = [1, 1]} : vector<8x8xi32> to vector<8x1xi32>
    %24 = vector.broadcast %23 : vector<8x1xi32> to vector<8x128xi32>
    %25 = vector.broadcast %3 : vector<1x128xi32> to vector<8x128xi32>
    %26 = arith.cmpi eq, %24, %25 : vector<8x128xi32>
    %27 = arith.extui %26 : vector<8x128xi1> to vector<8x128xi32>
    %28 = arith.addi %22, %27 : vector<8x128xi32>
    %29 = vector.extract_strided_slice %0 {offsets = [0, 4], sizes = [8, 1], strides = [1, 1]} : vector<8x8xi32> to vector<8x1xi32>
    %30 = vector.broadcast %29 : vector<8x1xi32> to vector<8x128xi32>
    %31 = vector.broadcast %3 : vector<1x128xi32> to vector<8x128xi32>
    %32 = arith.cmpi eq, %30, %31 : vector<8x128xi32>
    %33 = arith.extui %32 : vector<8x128xi1> to vector<8x128xi32>
    %34 = arith.addi %28, %33 : vector<8x128xi32>
    %35 = vector.extract_strided_slice %0 {offsets = [0, 5], sizes = [8, 1], strides = [1, 1]} : vector<8x8xi32> to vector<8x1xi32>
    %36 = vector.broadcast %35 : vector<8x1xi32> to vector<8x128xi32>
    %37 = vector.broadcast %3 : vector<1x128xi32> to vector<8x128xi32>
    %38 = arith.cmpi eq, %36, %37 : vector<8x128xi32>
    %39 = arith.extui %38 : vector<8x128xi1> to vector<8x128xi32>
    %40 = arith.addi %34, %39 : vector<8x128xi32>
    %41 = vector.extract_strided_slice %0 {offsets = [0, 6], sizes = [8, 1], strides = [1, 1]} : vector<8x8xi32> to vector<8x1xi32>
    %42 = vector.broadcast %41 : vector<8x1xi32> to vector<8x128xi32>
    %43 = vector.broadcast %3 : vector<1x128xi32> to vector<8x128xi32>
    %44 = arith.cmpi eq, %42, %43 : vector<8x128xi32>
    %45 = arith.extui %44 : vector<8x128xi1> to vector<8x128xi32>
    %46 = arith.addi %40, %45 : vector<8x128xi32>
    %47 = vector.extract_strided_slice %0 {offsets = [0, 7], sizes = [8, 1], strides = [1, 1]} : vector<8x8xi32> to vector<8x1xi32>
    %48 = vector.broadcast %47 : vector<8x1xi32> to vector<8x128xi32>
    %49 = vector.broadcast %3 : vector<1x128xi32> to vector<8x128xi32>
    %50 = arith.cmpi eq, %48, %49 : vector<8x128xi32>
    %51 = arith.extui %50 : vector<8x128xi1> to vector<8x128xi32>
    %52 = arith.addi %46, %51 : vector<8x128xi32>
    %53 = arith.sitofp %52 : vector<8x128xi32> to vector<8x128xf32>
    %c0_2 = arith.constant 0 : index
    %c0_3 = arith.constant 0 : index
    %54 = vector.load %arg2[%c0_2, %c0_3] : memref<128x32xf32, #tpu.memory_space<vmem>>, vector<128x32xf32>
    %cst = arith.constant dense<0.000000e+00> : vector<8x32xf32>
    %55 = tpu.matmul %53, %54, %cst {dimension_numbers = #tpu.dot_dimension_numbers<[1], [0], [0], [1], [0, 0, 1, 1], [], []>} : vector<8x128xf32>, vector<128x32xf32>, vector<8x32xf32> -> vector<8x32xf32>
    %c0_i32_4 = arith.constant 0 : i32
    %56 = vector.broadcast %c0_i32_4 : i32 to vector<8x8xi32>
    %57 = arith.cmpi sge, %0, %56 : vector<8x8xi32>
    %58 = arith.extui %57 : vector<8x8xi1> to vector<8x8xi32>
    %59 = arith.sitofp %58 : vector<8x8xi32> to vector<8x8xf32>
    %cst_5 = arith.constant dense<0.000000e+00> : vector<8xf32>
    %60 = vector.multi_reduction <add>, %59, %cst_5 [1] : vector<8x8xf32> to vector<8xf32>
    %61 = vector.shape_cast %60 : vector<8xf32> to vector<8x1xf32>
    %cst_6 = arith.constant 1.000000e+00 : f32
    %62 = vector.broadcast %cst_6 : f32 to vector<8x1xf32>
    %63 = arith.maximumf %61, %62 : vector<8x1xf32>
    %64 = vector.broadcast %63 : vector<8x1xf32> to vector<8x32xf32>
    %65 = arith.divf %55, %64 : vector<8x32xf32>
    %c0_7 = arith.constant 0 : index
    %c0_8 = arith.constant 0 : index
    %66 = vector.load %arg3[%c0_7, %c0_8] : memref<32x128xf32, #tpu.memory_space<vmem>>, vector<32x128xf32>
    %cst_9 = arith.constant dense<0.000000e+00> : vector<8x128xf32>
    %67 = tpu.matmul %65, %66, %cst_9 {dimension_numbers = #tpu.dot_dimension_numbers<[1], [0], [0], [1], [0, 0, 1, 1], [], []>} : vector<8x32xf32>, vector<32x128xf32>, vector<8x128xf32> -> vector<8x128xf32>
    %68 = tpu.iota {dimensions = array<i32: 1>} : vector<1x128xi32>
    %c8_i32 = arith.constant 8 : i32
    %69 = vector.broadcast %c8_i32 : i32 to vector<1x128xi32>
    %70 = arith.cmpi slt, %68, %69 : vector<1x128xi32>
    %cst_10 = arith.constant 0xFF800000 : f32
    %71 = vector.shape_cast %70 : vector<1x128xi1> to vector<1x128xi1>
    %72 = vector.broadcast %71 : vector<1x128xi1> to vector<8x128xi1>
    %73 = vector.broadcast %cst_10 : f32 to vector<8x128xf32>
    %74 = arith.select %72, %67, %73 : vector<8x128xi1>, vector<8x128xf32>
    %cst_11 = arith.constant dense<0xFF800000> : vector<8xf32>
    %75 = vector.multi_reduction <maximumf>, %74, %cst_11 [1] : vector<8x128xf32> to vector<8xf32>
    %76 = vector.shape_cast %75 : vector<8xf32> to vector<8x1xf32>
    %77 = vector.broadcast %76 : vector<8x1xf32> to vector<8x128xf32>
    %78 = arith.subf %74, %77 : vector<8x128xf32>
    %79 = math.exp %78 : vector<8x128xf32>
    %cst_12 = arith.constant dense<0.000000e+00> : vector<8xf32>
    %80 = vector.multi_reduction <add>, %79, %cst_12 [1] : vector<8x128xf32> to vector<8xf32>
    %81 = vector.shape_cast %80 : vector<8xf32> to vector<8x1xf32>
    %82 = math.log %81 : vector<8x1xf32>
    %83 = vector.broadcast %82 : vector<8x1xf32> to vector<8x128xf32>
    %84 = arith.subf %78, %83 : vector<8x128xf32>
    %cst_13 = arith.constant 0.000000e+00 : f32
    %85 = vector.shape_cast %70 : vector<1x128xi1> to vector<1x128xi1>
    %86 = vector.broadcast %85 : vector<1x128xi1> to vector<8x128xi1>
    %87 = vector.broadcast %cst_13 : f32 to vector<8x128xf32>
    %88 = arith.select %86, %84, %87 : vector<8x128xi1>, vector<8x128xf32>
    %c0_14 = arith.constant 0 : index
    %c0_15 = arith.constant 0 : index
    %89 = vector.load %arg4[%c0_14, %c0_15] : memref<8x128xf32, #tpu.memory_space<vmem>>, vector<8x128xf32>
    tpu.vector_store %arg4[%c0_14, %c0_15], %88 {strides = array<i32>} : memref<8x128xf32, #tpu.memory_space<vmem>>, vector<8x128xf32>,
    return
  }
  func.func @transform_0(%arg0: i32) -> (i32, i32) {
    %c0_i32 = arith.constant 0 : i32
    %c0_i32_0 = arith.constant 0 : i32
    return %arg0, %c0_i32 : i32, i32
  }
  func.func @transform_1(%arg0: i32) -> (i32, i32) {
    %c0_i32 = arith.constant 0 : i32
    %c0_i32_0 = arith.constant 0 : i32
    %c0_i32_1 = arith.constant 0 : i32
    return %c0_i32, %c0_i32_0 : i32, i32
  }
  func.func @transform_2(%arg0: i32) -> (i32, i32) {
    %c0_i32 = arith.constant 0 : i32
    %c0_i32_0 = arith.constant 0 : i32
    %c0_i32_1 = arith.constant 0 : i32
    return %c0_i32, %c0_i32_0 : i32, i32
  }
  func.func @transform_3(%arg0: i32) -> (i32, i32) {
    %c0_i32 = arith.constant 0 : i32
    %c0_i32_0 = arith.constant 0 : i32
    return %arg0, %c0_i32 : i32, i32
  }
}

</mosaic_0001>

<llo_original>
// kernel: tpu_custom_call.1
$region0: #{tpu_custom_call.1}
  #allocation0 [shape = 'u32[]', space=smem, size = 0x4, offset = 0x4, fixed_abs, tag = 'smem constant byte address 0x4 - core index']
  #allocation1 [shape = 'u32[144,128]{1,0:T(1,128)}', space=vmem, size = 0x12000, scoped, tag = 'internal scratch']
  %s0 = inlined_call_operand.vmem [shape: s32[8,8], index: 0, kind: input, shape index: {}]
  %s1 = inlined_call_operand.vmem [shape: f32[128,32], index: 1, kind: input, shape index: {}]
  %s2 = inlined_call_operand.vmem [shape: f32[32,128], index: 2, kind: input, shape index: {}]
  %s3 = inlined_call_operand.hbm [shape: f32[8,128], index: 3, kind: output, shape index: {}]
  %s4 = sld [smem:[#allocation0]]
  $region22: #{tpu_custom_call.1} parent=0
    _
  %s6 = ssub.s32 1, %s4
  %s7 = scalar_select 0, %s6, %s4
  $region1: #{tpu_custom_call.1} parent=0
    #allocation2 [shape = 'u8[4096]{0}', space=vmem, size = 0x1000, scoped, tag = 'output window, operand 0, single buffered']
    #allocation3 [shape = 's32[1]{0}', space=sflag, size = 0x4, scoped, tag = 'scoped memory for tpu_custom_call.1']
    %8 = vsyncpa [#allocation3], 0
    // Predicated region
    $region2: #{tpu_custom_call.1} parent=1 // pred_check
      _
    $region3: #{tpu_custom_call.1} parent=1 // pred_check_branch
      %10 = sbr.rel (0) target = $region5
    $region4: #{tpu_custom_call.1} parent=1 // pred_region
      _
    $region5: #{tpu_custom_call.1} parent=1 // pred_fallthru
      _
    // Predicated region
    $region6: #{tpu_custom_call.1} parent=1 // pred_check
      _
    $region7: #{tpu_custom_call.1} parent=1 // pred_check_branch
      %12 = sbr.rel (0) target = $region9
    $region8: #{tpu_custom_call.1} parent=1 // pred_region
      _
    $region9: #{tpu_custom_call.1} parent=1 // pred_fallthru
      _
    // Predicated region
    $region10: #{tpu_custom_call.1} parent=1 // pred_check
      _
    $region11: #{tpu_custom_call.1} parent=1 // pred_check_branch
      %14 = sbr.rel (0) target = $region13
    $region12: #{tpu_custom_call.1} parent=1 // pred_region
      _
    $region13: #{tpu_custom_call.1} parent=1 // pred_fallthru
      _
    %v15 = vld [vmem:[%s0] sm:$0xff]
    %v16 = vlaneseq
    %v17 = vand.u32 %v16, 127
    %18 = vset.pattern.permute.xlu0 0
    %19 = vperm.xlu0 %18, %v15
    %v20 = vpop.permute.xlu0 %19
    %vm21 = vcmp.eq.s32.totalorder %v20, %v17
    %v22 = vsel %vm21, 1, 0
    %23 = vset.pattern.permute.xlu0 1
    %24 = vperm.xlu0 %23, %v15
    %v25 = vpop.permute.xlu0 %24
    %vm26 = vcmp.eq.s32.totalorder %v25, %v17
    %v27 = vsel %vm26, 1, 0
    %v28 = vadd.s32 %v22, %v27
    %29 = vset.pattern.permute.xlu0 2
    %30 = vperm.xlu0 %29, %v15
    %v31 = vpop.permute.xlu0 %30
    %vm32 = vcmp.eq.s32.totalorder %v31, %v17
    %v33 = vsel %vm32, 1, 0
    %v34 = vadd.s32 %v28, %v33
    %35 = vset.pattern.permute.xlu0 3
    %36 = vperm.xlu0 %35, %v15
    %v37 = vpop.permute.xlu0 %36
    %vm38 = vcmp.eq.s32.totalorder %v37, %v17
    %v39 = vsel %vm38, 1, 0
    %v40 = vadd.s32 %v34, %v39
    %41 = vset.pattern.permute.xlu0 4
    %42 = vperm.xlu0 %41, %v15
    %v43 = vpop.permute.xlu0 %42
    %vm44 = vcmp.eq.s32.totalorder %v43, %v17
    %v45 = vsel %vm44, 1, 0
    %v46 = vadd.s32 %v40, %v45
    %47 = vset.pattern.permute.xlu0 5
    %48 = vperm.xlu0 %47, %v15
    %v49 = vpop.permute.xlu0 %48
    %vm50 = vcmp.eq.s32.totalorder %v49, %v17
    %v51 = vsel %vm50, 1, 0
    %v52 = vadd.s32 %v46, %v51
    %53 = vset.pattern.permute.xlu0 6
    %54 = vperm.xlu0 %53, %v15
    %v55 = vpop.permute.xlu0 %54
    %vm56 = vcmp.eq.s32.totalorder %v55, %v17
    %v57 = vsel %vm56, 1, 0
    %v58 = vadd.s32 %v52, %v57
    %59 = vset.pattern.permute.xlu0 7
    %60 = vperm.xlu0 %59, %v15
    %v61 = vpop.permute.xlu0 %60
    %vm62 = vcmp.eq.s32.totalorder %v61, %v17
    %v63 = vsel %vm62, 1, 0
    %v64 = vadd.s32 %v58, %v63
    %v65 = vcvt.s32.f32 %v64
    %v66 = vld [vmem:[%s1] sm:$0xff]
    %v67 = vld [vmem:[%s1 + $0x8] sm:$0xff]
    %v68 = vld [vmem:[%s1 + $0x10] sm:$0xff]
    %v69 = vld [vmem:[%s1 + $0x18] sm:$0xff]
    %v70 = vld [vmem:[%s1 + $0x20] sm:$0xff]
    %v71 = vld [vmem:[%s1 + $0x28] sm:$0xff]
    %v72 = vld [vmem:[%s1 + $0x30] sm:$0xff]
    %v73 = vld [vmem:[%s1 + $0x38] sm:$0xff]
    %v74 = vld [vmem:[%s1 + $0x40] sm:$0xff]
    %v75 = vld [vmem:[%s1 + $0x48] sm:$0xff]
    %v76 = vld [vmem:[%s1 + $0x50] sm:$0xff]
    %v77 = vld [vmem:[%s1 + $0x58] sm:$0xff]
    %v78 = vld [vmem:[%s1 + $0x60] sm:$0xff]
    %v79 = vld [vmem:[%s1 + $0x68] sm:$0xff]
    %v80 = vld [vmem:[%s1 + $0x70] sm:$0xff]
    %v81 = vld [vmem:[%s1 + $0x78] sm:$0xff]
    %82 = vmatprep.subr.mxu0 0.0
    %83 = vmatpush1.msra.mxu0 %v81
    %84 = vmatprep.subr.mxu0 0.0
    %85 = vmatpush1.msra.mxu0 %v80
    %86 = vmatprep.subr.mxu0 0.0
    %87 = vmatpush1.msra.mxu0 %v79
    %88 = vmatprep.subr.mxu0 0.0
    %89 = vmatpush1.msra.mxu0 %v78
    %90 = vmatprep.subr.mxu0 0.0
    %91 = vmatpush1.msra.mxu0 %v77
    %92 = vmatprep.subr.mxu0 0.0
    %93 = vmatpush1.msra.mxu0 %v76
    %94 = vmatprep.subr.mxu0 0.0
    %95 = vmatpush1.msra.mxu0 %v75
    %96 = vmatprep.subr.mxu0 0.0
    %97 = vmatpush1.msra.mxu0 %v74
    %98 = vmatprep.subr.mxu0 0.0
    %99 = vmatpush1.msra.mxu0 %v73
    %100 = vmatprep.subr.mxu0 0.0
    %101 = vmatpush1.msra.mxu0 %v72
    %102 = vmatprep.subr.mxu0 0.0
    %103 = vmatpush1.msra.mxu0 %v71
    %104 = vmatprep.subr.mxu0 0.0
    %105 = vmatpush1.msra.mxu0 %v70
    %106 = vmatprep.subr.mxu0 0.0
    %107 = vmatpush1.msra.mxu0 %v69
    %108 = vmatprep.subr.mxu0 0.0
    %109 = vmatpush1.msra.mxu0 %v68
    %110 = vmatprep.subr.mxu0 0.0
    %111 = vmatpush1.msra.mxu0 %v67
    %112 = vmatprep.subr.mxu0 0.0
    %113 = vmatpush1.msra.mxu0 %v66
    %114 = vmatprep.subr.mxu0 0.0
    %115 = vmatpush2.msra.mxu0 0.0
    %116 = vmatprep.subr.mxu0 0.0
    %117 = vmatpush2.msra.mxu0 0.0
    %118 = vmatprep.subr.mxu0 0.0
    %119 = vmatpush2.msra.mxu0 0.0
    %120 = vmatprep.subr.mxu0 0.0
    %121 = vmatpush2.msra.mxu0 0.0
    %122 = vmatprep.subr.mxu0 0.0
    %123 = vmatpush2.msra.mxu0 0.0
    %124 = vmatprep.subr.mxu0 0.0
    %125 = vmatpush2.msra.mxu0 0.0
    %126 = vmatprep.subr.mxu0 0.0
    %127 = vmatpush2.msra.mxu0 0.0
    %128 = vmatprep.subr.mxu0 0.0
    %129 = vmatpush2.msra.mxu0 0.0
    %130 = vmatprep.subr.mxu0 0.0
    %131 = vmatpush2.msra.mxu0 0.0
    %132 = vmatprep.subr.mxu0 0.0
    %133 = vmatpush2.msra.mxu0 0.0
    %134 = vmatprep.subr.mxu0 0.0
    %135 = vmatpush2.msra.mxu0 0.0
    %136 = vmatprep.subr.mxu0 0.0
    %137 = vmatpush2.msra.mxu0 0.0
    %138 = vmatprep.subr.mxu0 0.0
    %139 = vmatpush2.msra.mxu0 0.0
    %140 = vmatprep.subr.mxu0 0.0
    %141 = vmatpush2.msra.mxu0 0.0
    %142 = vmatprep.subr.mxu0 0.0
    %143 = vmatpush2.msra.mxu0 0.0
    %144 = vmatprep.subr.mxu0 0.0
    %145 = vmatpush2.msra.mxu0 0.0
    %146 = vmatprep.mubr.f32.mxu0 0.0
    %147 = vmatmul.mubr.f32.gmra.mxu0 %v65
    %v148 = vpop.f32.mrf.mxu0
    %v149 = vadd.f32 0.0, %v148
    %v150 = vpop.f32.mrf.mxu0
    %151 = vdwg.mxu0
    %vm152 = vcmp.ge.s32.totalorder %v15, 0
    %v153 = vsel %vm152, 1, 0
    %v154 = vcvt.s32.f32 %v153
    %vm155 = vcmask 64512
    %v156 = vsel %vm155, %v154, 0.0
    %157 = vadd.xlane.f32.xlu0 %v156
    %v158 = vpop.xlane.xlu0 %157
    %v159 = vmax.f32 %v158, 1.0
    %v160 = vrcp.pop %v159
    %v161 = vmul.f32 %v149, %v160
    %v162 = vld [vmem:[%s2] sm:$0xff]
    %v163 = vld [vmem:[%s2 + $0x8] sm:$0xff]
    %v164 = vld [vmem:[%s2 + $0x10] sm:$0xff]
    %v165 = vld [vmem:[%s2 + $0x18] sm:$0xff]
    %vm166 = vcmask 261120
    %v168 = vsel %vm166, %v161, 0
    %170 = vmatprep.subr.mxu0 0.0
    %171 = vmatpush1.msra.mxu0 0.0
    %172 = vmatprep.subr.mxu0 0.0
    %173 = vmatpush1.msra.mxu0 0.0
    %174 = vmatprep.subr.mxu0 0.0
    %175 = vmatpush1.msra.mxu0 0.0
    %176 = vmatprep.subr.mxu0 0.0
    %177 = vmatpush1.msra.mxu0 0.0
    %178 = vmatprep.subr.mxu0 0.0
    %179 = vmatpush1.msra.mxu0 0.0
    %180 = vmatprep.subr.mxu0 0.0
    %181 = vmatpush1.msra.mxu0 0.0
    %182 = vmatprep.subr.mxu0 0.0
    %183 = vmatpush1.msra.mxu0 0.0
    %184 = vmatprep.subr.mxu0 0.0
    %185 = vmatpush1.msra.mxu0 0.0
    %186 = vmatprep.subr.mxu0 0.0
    %187 = vmatpush1.msra.mxu0 0.0
    %188 = vmatprep.subr.mxu0 0.0
    %189 = vmatpush1.msra.mxu0 0.0
    %190 = vmatprep.subr.mxu0 0.0
    %191 = vmatpush1.msra.mxu0 0.0
    %192 = vmatprep.subr.mxu0 0.0
    %193 = vmatpush1.msra.mxu0 0.0
    %194 = vmatprep.subr.mxu0 0.0
    %195 = vmatpush1.msra.mxu0 %v165
    %196 = vmatprep.subr.mxu0 0.0
    %197 = vmatpush1.msra.mxu0 %v164
    %198 = vmatprep.subr.mxu0 0.0
    %199 = vmatpush1.msra.mxu0 %v163
    %200 = vmatprep.subr.mxu0 0.0
    %201 = vmatpush1.msra.mxu0 %v162
    %202 = vmatprep.subr.mxu0 0.0
    %203 = vmatpush2.msra.mxu0 0.0
    %204 = vmatprep.subr.mxu0 0.0
    %205 = vmatpush2.msra.mxu0 0.0
    %206 = vmatprep.subr.mxu0 0.0
    %207 = vmatpush2.msra.mxu0 0.0
    %208 = vmatprep.subr.mxu0 0.0
    %209 = vmatpush2.msra.mxu0 0.0
    %210 = vmatprep.subr.mxu0 0.0
    %211 = vmatpush2.msra.mxu0 0.0
    %212 = vmatprep.subr.mxu0 0.0
    %213 = vmatpush2.msra.mxu0 0.0
    %214 = vmatprep.subr.mxu0 0.0
    %215 = vmatpush2.msra.mxu0 0.0
    %216 = vmatprep.subr.mxu0 0.0
    %217 = vmatpush2.msra.mxu0 0.0
    %218 = vmatprep.subr.mxu0 0.0
    %219 = vmatpush2.msra.mxu0 0.0
    %220 = vmatprep.subr.mxu0 0.0
    %221 = vmatpush2.msra.mxu0 0.0
    %222 = vmatprep.subr.mxu0 0.0
    %223 = vmatpush2.msra.mxu0 0.0
    %224 = vmatprep.subr.mxu0 0.0
    %225 = vmatpush2.msra.mxu0 0.0
    %226 = vmatprep.subr.mxu0 0.0
    %227 = vmatpush2.msra.mxu0 0.0
    %228 = vmatprep.subr.mxu0 0.0
    %229 = vmatpush2.msra.mxu0 0.0
    %230 = vmatprep.subr.mxu0 0.0
    %231 = vmatpush2.msra.mxu0 0.0
    %232 = vmatprep.subr.mxu0 0.0
    %233 = vmatpush2.msra.mxu0 0.0
    %234 = vmatprep.mubr.f32.mxu0 0.0
    %235 = vmatmul.mubr.f32.gmra.mxu0 %v168
    %v236 = vpop.f32.mrf.mxu0
    %v237 = vadd.f32 0.0, %v236
    %v238 = vpop.f32.mrf.mxu0
    %239 = vdwg.mxu0
    %vm240 = vcmp.lt.s32.totalorder %v17, 8
    %v241 = vsel %vm240, 1, 0
    %vm242 = vcmp.eq.s32.totalorder %v241, 1
    %v243 = vsel %vm242, %v237, -inf
    %244 = vmax.xlane.f32.xlu0 %v243
    %v245 = vpop.xlane.xlu0 %244
    %v246 = vsub.f32 %v243, %v245
    %v247 = vmul.f32 %v246, 1.442695
    %v248 = vpow.pop %v247
    %249 = vadd.xlane.f32.xlu0 %v248
    %v250 = vpop.xlane.xlu0 %249
    %v251 = vlog2.pop %v250
    %v252 = vmul.f32 %v251, 0.6931472
    %v253 = vsub.f32 %v246, %v252
    %v254 = vsel %vm242, %v253, 0.0
    %255 = vst [vmem:[#allocation2] sm:$0xff] %v254
    // Predicated region
    $region14: #{tpu_custom_call.1} parent=1 // pred_check
      _
    $region15: #{tpu_custom_call.1} parent=1 // pred_check_branch
      %257 = sbr.rel (0) target = $region17
    $region16: #{tpu_custom_call.1} parent=1 // pred_region
      %s259 = ssub.s32 128, 128
      %260 = vsyncadd [#allocation3], %s259
      %s262 = sshll.u32 [#allocation2], 4
      %s263 = int_to_ptr.vmem [resolvable:$true] %s262
      %265 = dma.vmem_to_hbm [thread:$0]  %s263, 128, %s3, [#allocation3]
    $region17: #{tpu_custom_call.1} parent=1 // pred_fallthru
      _
    // Predicated region
    $region18: #{tpu_custom_call.1} parent=1 // pred_check
      _
    $region19: #{tpu_custom_call.1} parent=1 // pred_check_branch
      %267 = sbr.rel (0) target = $region21
    $region20: #{tpu_custom_call.1} parent=1 // pred_region
      %268 = dma.done [#allocation3], 128
    $region21: #{tpu_custom_call.1} parent=1 // pred_fallthru
      _
    %269 = vsyncpa [#allocation3], 1

</llo_original>
